<compile_context>
chip_gen: v5e
topology: v5e:2x2
jax: 0.10.0
libtpu: 0.0.40
codegen_flags: <defaults>
</compile_context>

<pallas_src>
import jax
import jax.numpy as jnp
from jax.experimental import pallas as pl
from jax.experimental.pallas import tpu as pltpu


def _l2norm_kernel(s_ref, x_ref, o_ref):
    # s_ref: (1,) scalar (prefetched into SMEM); x_ref/o_ref: (tile_b, D) VMEM tiles.
    x = x_ref[...].astype(jnp.float32)
    sq = jnp.sum(x * x, axis=1, keepdims=True)          # (tile_b, 1) row sum-of-squares
    # TODO(synk): no epsilon — faithful to the torch module (all-zero rows -> inf/NaN).
    inv = jax.lax.rsqrt(sq)                              # one EUP rsqrt per row
    row_scale = s_ref[0] * inv                           # fold scalar into per-row factor
    o_ref[...] = (x * row_scale).astype(o_ref.dtype)


def normalization_layer(x, norm_s, *,
                        max_tile_b=1024,
                        vmem_budget_bytes=24 * 1024 * 1024):
    """Pallas equivalent of NormalizationLayer.forward.

    x: (B, D) array, norm_s: python float / scalar (the learnable scale).
    """
    orig_B, orig_D = x.shape
    itemsize = jnp.dtype(x.dtype).itemsize

    # --- Lane-dense feature dim: pad D up to a multiple of 128. Zero padding
    # does not change the row L2 norm, so results are exact after slicing.
    D = ((orig_D + 127) // 128) * 128
    if D != orig_D:
        x = jnp.pad(x, ((0, 0), (0, D - orig_D)))

    # --- Batch tile: largest tile whose double-buffered working set
    # (2 input + 2 output buffers) fits the VMEM budget; sublane-aligned.
    row_align = 16 if itemsize < 4 else 8
    rows_fit = vmem_budget_bytes // (4 * D * itemsize)
    tile_b = max(row_align, min(max_tile_b, (rows_fit // row_align) * row_align))
    # Don't tile wider than the (aligned) batch itself.
    tile_b = int(min(tile_b, ((orig_B + row_align - 1) // row_align) * row_align))

    # --- Pad batch to a multiple of tile_b (padded rows discarded at the end).
    B = ((orig_B + tile_b - 1) // tile_b) * tile_b
    if B != orig_B:
        x = jnp.pad(x, ((0, B - orig_B), (0, 0)))

    s = jnp.asarray(norm_s, dtype=jnp.float32).reshape((1,))

    grid = (B // tile_b,)
    cost = pl.CostEstimate(
        flops=3 * B * D,                     # square + row-sum + scale-mul
        transcendentals=B,                   # one rsqrt per row
        bytes_accessed=2 * B * D * itemsize, # read x + write out
    )

    out = pl.pallas_call(
        _l2norm_kernel,
        out_shape=jax.ShapeDtypeStruct((B, D), x.dtype),
        grid_spec=pltpu.PrefetchScalarGridSpec(
            num_scalar_prefetch=1,                                   # norm_s -> SMEM
            grid=grid,
            in_specs=[pl.BlockSpec((tile_b, D), lambda i, _s: (i, 0))],
            out_specs=pl.BlockSpec((tile_b, D), lambda i, _s: (i, 0)),
        ),
        compiler_params=pltpu.CompilerParams(
            dimension_semantics=("parallel",),
            vmem_limit_bytes=32 * 1024 * 1024,   # covers the 24 MiB buffer budget on all gens
        ),
        cost_estimate=cost,
    )(s, x)

    if B != orig_B or D != orig_D:
        out = out[:orig_B, :orig_D]
    return out


if __name__ == "__main__":
    key = jax.random.PRNGKey(0)
    B, D = 16, 128
    x = jax.random.normal(key, (B, D), dtype=jnp.float32)

    # Deterministic "learned" scale parameter (matches __init__ default 1.0).
    norm_s = 1.0

    out = normalization_layer(x, norm_s)
    out = jax.block_until_ready(out)

    # Pure-JAX reference (same semantics as the torch module).
    ref = norm_s * x / jnp.linalg.norm(x, axis=1, keepdims=True)
    assert out.shape == x.shape
    assert jnp.allclose(out, ref, atol=1e-5, rtol=1e-5), "mismatch vs reference"

    print("KERNEL_OK")
</pallas_src>

<mosaic_0001>
module attributes {stable_mosaic.version = 11 : i64} {
  func.func @_l2norm_kernel(%arg0: i32, %arg1: memref<1xf32, #tpu.memory_space<smem>>, %arg2: memref<16x128xf32, #tpu.memory_space<vmem>>, %arg3: memref<16x128xf32, #tpu.memory_space<vmem>>) attributes {dimension_semantics = [#tpu.dimension_semantics<parallel>], iteration_bounds = array<i64: 1>, scalar_prefetch = 1 : i64, scratch_operands = 0 : i64, tpu.core_type = #tpu.core_type<tc>, window_params = [{transform_indices = @transform_0, window_bounds = array<i64: 16, 128>}, {transform_indices = @transform_1, window_bounds = array<i64: 16, 128>}]} {
    %c0 = arith.constant 0 : index
    %c0_0 = arith.constant 0 : index
    %0 = vector.load %arg2[%c0, %c0_0] : memref<16x128xf32, #tpu.memory_space<vmem>>, vector<16x128xf32>
    %1 = arith.mulf %0, %0 : vector<16x128xf32>
    %cst = arith.constant dense<0.000000e+00> : vector<16xf32>
    %2 = vector.multi_reduction <add>, %1, %cst [1] : vector<16x128xf32> to vector<16xf32>
    %3 = vector.shape_cast %2 : vector<16xf32> to vector<16x1xf32>
    %4 = math.rsqrt %3 : vector<16x1xf32>
    %c0_1 = arith.constant 0 : index
    %5 = memref.load %arg1[%c0_1] : memref<1xf32, #tpu.memory_space<smem>>
    %6 = vector.broadcast %5 : f32 to vector<16x1xf32>
    %7 = arith.mulf %6, %4 : vector<16x1xf32>
    %8 = vector.broadcast %7 : vector<16x1xf32> to vector<16x128xf32>
    %9 = arith.mulf %0, %8 : vector<16x128xf32>
    %c0_2 = arith.constant 0 : index
    %c0_3 = arith.constant 0 : index
    %10 = vector.load %arg3[%c0_2, %c0_3] : memref<16x128xf32, #tpu.memory_space<vmem>>, vector<16x128xf32>
    tpu.vector_store %arg3[%c0_2, %c0_3], %9 {strides = array<i32>} : memref<16x128xf32, #tpu.memory_space<vmem>>, vector<16x128xf32>,
    return
  }
  func.func @transform_0(%arg0: i32, %arg1: memref<1xf32, #tpu.memory_space<smem>>) -> (i32, i32) {
    %c0_i32 = arith.constant 0 : i32
    %c0_i32_0 = arith.constant 0 : i32
    return %arg0, %c0_i32 : i32, i32
  }
  func.func @transform_1(%arg0: i32, %arg1: memref<1xf32, #tpu.memory_space<smem>>) -> (i32, i32) {
    %c0_i32 = arith.constant 0 : i32
    %c0_i32_0 = arith.constant 0 : i32
    return %arg0, %c0_i32 : i32, i32
  }
}

</mosaic_0001>

<llo_original>
// kernel: tpu_custom_call.1
$region0: #{tpu_custom_call.1}
  #allocation0 [shape = 'u32[]', space=smem, size = 0x4, offset = 0x4, fixed_abs, tag = 'smem constant byte address 0x4 - core index']
  #allocation1 [shape = 'u32[72,128]{1,0:T(1,128)}', space=vmem, size = 0x9000, scoped, tag = 'internal scratch']
  #allocation2 [shape = 's32[1]{0}', space=sflag, size = 0x4, scoped, tag = 'scoped memory for tpu_custom_call.1']
  #allocation3 [shape = 'f32[1]{0:T(128)S(6)}', space=smem, size = 0x200, scoped, tag = 'prefetched SMEM operand 0']
  %s0 = inlined_call_operand.<no memory space> [shape: f32[1], index: 0, kind: input, shape index: {}]
  %s1 = inlined_call_operand.hbm [shape: f32[16,128], index: 1, kind: input, shape index: {}]
  %s2 = inlined_call_operand.hbm [shape: f32[16,128], index: 2, kind: output, shape index: {}]
  %s3 = sld [smem:[#allocation0]]
  $region18: #{tpu_custom_call.1} parent=0
    _
  %s5 = ssub.s32 1, %s3
  %s6 = scalar_select 0, %s5, %s3
  %7 = sst [smem:[#allocation3]] %s0
  $region1: #{tpu_custom_call.1} parent=0
    #allocation4 [shape = 'u8[8192]{0}', space=vmem, size = 0x2000, scoped, tag = 'input window, operand 1, single buffered']
    #allocation5 [shape = 's32[1]{0}', space=sflag, size = 0x4, scoped, tag = 'scoped memory for tpu_custom_call.1']
    #allocation6 [shape = 's32[1]{0}', space=sflag, size = 0x4, scoped, tag = 'scoped memory for tpu_custom_call.1']
    #allocation7 [shape = 'u8[8192]{0}', space=vmem, size = 0x2000, scoped, tag = 'output window, operand 0, single buffered']
    %8 = vsyncpa [#allocation5], 0
    %9 = vsyncpa [#allocation6], 0
    // Predicated region
    $region2: #{tpu_custom_call.1} parent=1 // pred_check
      _
    $region3: #{tpu_custom_call.1} parent=1 // pred_check_branch
      %11 = sbr.rel (0) target = $region5
    $region4: #{tpu_custom_call.1} parent=1 // pred_region
      %13 = vsyncadd [#allocation5], 0
      %s14 = sshll.u32 %s1, 4
      %s15 = int_to_ptr.hbm [resolvable:$true] %s14
      %s16 = sshll.u32 [#allocation4], 4
      %s17 = int_to_ptr.vmem [resolvable:$true] %s16
      %22 = dma.hbm_to_vmem [thread:$0]  %s15, 256, %s17, [#allocation5], 128, 128, 8
    $region5: #{tpu_custom_call.1} parent=1 // pred_fallthru
      _
    // Predicated region
    $region6: #{tpu_custom_call.1} parent=1 // pred_check
      _
    $region7: #{tpu_custom_call.1} parent=1 // pred_check_branch
      %24 = sbr.rel (0) target = $region9
    $region8: #{tpu_custom_call.1} parent=1 // pred_region
      %26 = dma.done [#allocation5], 256
    $region9: #{tpu_custom_call.1} parent=1 // pred_fallthru
      _
    %v27 = vld [vmem:[#allocation4] sm:$0xff]
    %v28 = vld [vmem:[#allocation4 + $0x8] sm:$0xff]
    %v29 = vmul.f32 %v27, %v27
    %v30 = vmul.f32 %v28, %v28
    %31 = vadd.xlane.f32.xlu0 %v29
    %v32 = vpop.xlane.xlu0 %31
    %33 = vadd.xlane.f32.xlu0 %v30
    %v34 = vpop.xlane.xlu0 %33
    %v35 = vrsqrt.pop %v32
    %v36 = vmul.f32 %v35, %v32
    %v37 = vmul.f32 %v36, %v35
    %v38 = vmul.f32 0.5, %v37
    %v39 = vsub.f32 1.5, %v38
    %v40 = vmul.f32 %v35, %v39
    %vm41 = vweird.f32 %v32
    %vm42 = vweird.f32 %v35
    %vm43 = vmor %vm41, %vm42
    %v44 = vsel %vm43, %v35, %v40
    %v45 = vrsqrt.pop %v34
    %v46 = vmul.f32 %v45, %v34
    %v47 = vmul.f32 %v46, %v45
    %v48 = vmul.f32 0.5, %v47
    %v49 = vsub.f32 1.5, %v48
    %v50 = vmul.f32 %v45, %v49
    %vm51 = vweird.f32 %v34
    %vm52 = vweird.f32 %v45
    %vm53 = vmor %vm51, %vm52
    %v54 = vsel %vm53, %v45, %v50
    %s55 = sld [smem:[#allocation3]]
    %v56 = vstv %s55
    %v57 = vmul.f32 %v56, %v44
    %v58 = vmul.f32 %v56, %v54
    %v59 = vmul.f32 %v27, %v57
    %v60 = vmul.f32 %v28, %v58
    %61 = vst [vmem:[#allocation7] sm:$0xff] %v59
    %62 = vst [vmem:[#allocation7 + $0x8] sm:$0xff] %v60
    // Predicated region
    $region10: #{tpu_custom_call.1} parent=1 // pred_check
      _
    $region11: #{tpu_custom_call.1} parent=1 // pred_check_branch
      %64 = sbr.rel (0) target = $region13
    $region12: #{tpu_custom_call.1} parent=1 // pred_region
      %66 = vsyncadd [#allocation6], 0
      %s67 = sshll.u32 [#allocation7], 4
      %s68 = int_to_ptr.vmem [resolvable:$true] %s67
      %s69 = sshll.u32 %s2, 4
      %s70 = int_to_ptr.hbm [resolvable:$true] %s69
      %75 = dma.vmem_to_hbm [thread:$0]  %s68, 256, %s70, [#allocation6], 128, 128, 8
    $region13: #{tpu_custom_call.1} parent=1 // pred_fallthru
      _
    // Predicated region
    $region14: #{tpu_custom_call.1} parent=1 // pred_check
      _
    $region15: #{tpu_custom_call.1} parent=1 // pred_check_branch
      %77 = sbr.rel (0) target = $region17
    $region16: #{tpu_custom_call.1} parent=1 // pred_region
      %79 = dma.done [#allocation6], 256
    $region17: #{tpu_custom_call.1} parent=1 // pred_fallthru
      _
    %80 = vsyncpa [#allocation5], 1
    %81 = vsyncpa [#allocation6], 1

</llo_original>
